<compile_context>
chip_gen: v6e
topology: v6e:2x2x1
jax: 0.10.0
libtpu: 0.0.40
codegen_flags: <defaults>
</compile_context>

<pallas_src>
import functools

import jax
import jax.numpy as jnp
from jax.experimental import pallas as pl
from jax.experimental.pallas import tpu as pltpu


# ---- Model hyperparameters (stand-in for `Parameters`) ----------------------
N_DIM = 16            # params.n_dim          (input feature dim)
SIZE_HIDDEN = 32      # params.size_hidden
NUM_HIDDEN_LAYER = 2  # params.num_hidden_layer
OUT_DIM = 8           # params.out_dim
BATCH = 8             # example batch size
BN_EPS = 1e-5


def _round_up(a, b):
    return ((a + b - 1) // b) * b


def topopt_mlp_kernel(x_ref, w0_ref, w1_ref, w2_ref, shift_ref, o_ref):
    """One batch tile in natural (batch, feature) layout.

    x_ref:     (TB, N_DIM)      f32   input tile (read straight from HBM, cast here)
    w0_ref:    (N_DIM, H)       bf16  Linear-0 weight, transposed, BN scale folded in
    w1_ref:    (H, H)           bf16  Linear-1 weight, transposed, BN scale folded in
    w2_ref:    (H, OUT_DIM)     bf16  output Linear weight, transposed
    shift_ref: (1, H)           f32   BN shift = beta - running_mean * scale
    o_ref:     (TB, OUT_DIM)    bf16  softmax probabilities
    """
    shift = shift_ref[...]                                    # (1, H) f32

    x = x_ref[...].astype(jnp.bfloat16)                       # (TB, N_DIM)

    # Hidden layer 0: Linear(no bias) -> BN(folded) -> ReLU -> Dropout(identity)
    h = jnp.dot(x, w0_ref[...], preferred_element_type=jnp.float32)       # (TB, H)
    h = jnp.maximum(h + shift, 0.0)

    # Hidden layer 1: Linear(no bias) -> BN(folded) -> ReLU -> Dropout(identity)
    h = jnp.dot(h.astype(jnp.bfloat16), w1_ref[...],
                preferred_element_type=jnp.float32)                        # (TB, H)
    h = jnp.maximum(h + shift, 0.0)

    # Output layer: Linear(no bias) -> Softmax over features (dim=1).
    logits = jnp.dot(h.astype(jnp.bfloat16), w2_ref[...],
                     preferred_element_type=jnp.float32)                   # (TB, OUT)
    m = jnp.max(logits, axis=-1, keepdims=True)                            # (TB, 1)
    e = jnp.exp(logits - m)
    s = jnp.sum(e, axis=-1, keepdims=True)                                 # (TB, 1)
    # Exact divide (NOT approx reciprocal): rows sum to 1 within dtype rounding.
    o_ref[...] = (e / s).astype(o_ref.dtype)


@functools.partial(jax.jit, static_argnames=("tile_batch",))
def topopt_nn_forward(x, w0, w1, w2, gamma, beta, run_mean, run_var,
                      *, tile_batch=2048):
    """x: (N, n_dim) f32.  Weights in PyTorch (out, in) shape.  BN params (H,).

    Returns (N, out_dim) bfloat16 softmax probabilities (eval-mode forward).
    tile_batch: batch tile size; sweep 2048-8192 for large N (multiple of 8).
    """
    n, n_dim = x.shape
    hd = w0.shape[0]
    out_dim = w2.shape[0]

    # ---- Batch tile selection -------------------------------------------------
    tb = min(int(tile_batch), _round_up(n, 8))
    tb = _round_up(tb, 8)
    # v7x megacore: if the batch is big enough but would land in a single tile,
    # split it in two so both TensorCores get work (no-op on v5e/v6e).
    if n >= 256 and pl.cdiv(n, tb) < 2:
        tb = _round_up(pl.cdiv(n, 2), 8)
    n_tiles = pl.cdiv(n, tb)

    # ---- Fold BatchNorm (eval running stats) into the weights / a shift -------
    # BN(y) = y * scale + shift, with scale = gamma / sqrt(var+eps).
    # Fold `scale` into the output rows of w0/w1 in f32 BEFORE the bf16 cast.
    scale = gamma.astype(jnp.float32) * jax.lax.rsqrt(
        run_var.astype(jnp.float32) + BN_EPS)                      # (H,)
    shift = beta.astype(jnp.float32) - run_mean.astype(jnp.float32) * scale
    shift_row = shift.reshape(1, hd)                               # (1, H) f32

    w0f = (w0.astype(jnp.float32) * scale[:, None]).T.astype(jnp.bfloat16)  # (n_dim, H)
    w1f = (w1.astype(jnp.float32) * scale[:, None]).T.astype(jnp.bfloat16)  # (H, H)
    w2t = w2.astype(jnp.bfloat16).T                                          # (H, out)

    # ---- Cost estimate (HBM-bound workload) ------------------------------------
    flops = 2 * n * (n_dim * hd + hd * hd + hd * out_dim)
    bytes_accessed = (n * n_dim * 4                                  # x in (f32)
                      + n * out_dim * 2                              # out (bf16)
                      + 2 * (n_dim * hd + hd * hd + hd * out_dim)    # bf16 weights
                      + 4 * hd)                                      # shift
    cost = pl.CostEstimate(flops=flops,
                           transcendentals=n * out_dim,
                           bytes_accessed=bytes_accessed)

    const = lambda r, c: pl.BlockSpec((r, c), lambda i: (0, 0))

    out = pl.pallas_call(
        topopt_mlp_kernel,
        out_shape=jax.ShapeDtypeStruct((n, out_dim), jnp.bfloat16),
        grid_spec=pltpu.PrefetchScalarGridSpec(
            num_scalar_prefetch=0,
            grid=(n_tiles,),
            in_specs=[
                pl.BlockSpec((tb, n_dim), lambda i: (i, 0)),   # x tile (batch-gridded)
                const(n_dim, hd),                              # w0 folded (resident)
                const(hd, hd),                                 # w1 folded (resident)
                const(hd, out_dim),                            # w2 (resident)
                const(1, hd),                                  # BN shift (resident)
            ],
            out_specs=pl.BlockSpec((tb, out_dim), lambda i: (i, 0)),
        ),
        compiler_params=pltpu.CompilerParams(
            dimension_semantics=("parallel",),                 # megacore on v7x
            vmem_limit_bytes=32 * 1024 * 1024),                # ample for tb<=8192
        cost_estimate=cost,
    )(x, w0f, w1f, w2t, shift_row)

    return out


def reference_forward(x, w0, w1, w2, gamma, beta, run_mean, run_var):
    """Pure-JAX f32 reference mirroring the PyTorch eval-mode forward."""
    def bn(h):
        return (h - run_mean) / jnp.sqrt(run_var + BN_EPS) * gamma + beta

    h = jnp.maximum(bn(x @ w0.T), 0.0)
    h = jnp.maximum(bn(h @ w1.T), 0.0)
    logits = h @ w2.T
    return jax.nn.softmax(logits, axis=1)


if __name__ == "__main__":
    key = jax.random.PRNGKey(0)
    k_x, k_w0, k_w1, k_w2, k_g, k_b, k_m, k_v, k_x2 = jax.random.split(key, 9)

    # Input (batch, n_dim)
    x = jax.random.normal(k_x, (BATCH, N_DIM), dtype=jnp.float32)

    # Linear weights in PyTorch (out_features, in_features) shape.
    w0 = 0.1 * jax.random.normal(k_w0, (SIZE_HIDDEN, N_DIM), dtype=jnp.float32)
    w1 = 0.1 * jax.random.normal(k_w1, (SIZE_HIDDEN, SIZE_HIDDEN), dtype=jnp.float32)
    w2 = 0.1 * jax.random.normal(k_w2, (OUT_DIM, SIZE_HIDDEN), dtype=jnp.float32)

    # Shared BatchNorm1d(size_hidden) parameters / running stats (deterministic).
    gamma = 1.0 + 0.1 * jax.random.normal(k_g, (SIZE_HIDDEN,), dtype=jnp.float32)
    beta = 0.1 * jax.random.normal(k_b, (SIZE_HIDDEN,), dtype=jnp.float32)
    run_mean = 0.1 * jax.random.normal(k_m, (SIZE_HIDDEN,), dtype=jnp.float32)
    run_var = jnp.abs(1.0 + 0.1 * jax.random.normal(k_v, (SIZE_HIDDEN,),
                                                    dtype=jnp.float32))

    # Small-batch case (single tile, tile adapts down to the batch size).
    out = topopt_nn_forward(x, w0, w1, w2, gamma, beta, run_mean, run_var)
    out = jax.block_until_ready(out)
    ref = reference_forward(x, w0, w1, w2, gamma, beta, run_mean, run_var)
    outf = out.astype(jnp.float32)
    assert out.shape == (BATCH, OUT_DIM)
    assert bool(jnp.all(jnp.isfinite(outf)))
    assert jnp.allclose(jnp.sum(outf, axis=1), 1.0, atol=5e-3)
    assert jnp.allclose(outf, ref, atol=5e-3, rtol=0)

    # Larger, multi-tile (gridded / pipelined) case: tb=256, grid=(2,),
    # which also exercises the two-TensorCore split path on v7x.
    x_big = jax.random.normal(k_x2, (512, N_DIM), dtype=jnp.float32)
    out_big = topopt_nn_forward(x_big, w0, w1, w2, gamma, beta, run_mean, run_var)
    out_big = jax.block_until_ready(out_big)
    ref_big = reference_forward(x_big, w0, w1, w2, gamma, beta, run_mean, run_var)
    out_big_f = out_big.astype(jnp.float32)
    assert out_big.shape == (512, OUT_DIM)
    assert bool(jnp.all(jnp.isfinite(out_big_f)))
    assert jnp.allclose(jnp.sum(out_big_f, axis=1), 1.0, atol=5e-3)
    assert jnp.allclose(out_big_f, ref_big, atol=5e-3, rtol=0)

    print("KERNEL_OK")
</pallas_src>

<mosaic_0001>
module attributes {stable_mosaic.version = 11 : i64} {
  func.func @topopt_mlp_kernel(%arg0: i32, %arg1: memref<8x16xf32, #tpu.memory_space<vmem>>, %arg2: memref<16x32xbf16, #tpu.memory_space<vmem>>, %arg3: memref<32x32xbf16, #tpu.memory_space<vmem>>, %arg4: memref<32x8xbf16, #tpu.memory_space<vmem>>, %arg5: memref<1x32xf32, #tpu.memory_space<vmem>>, %arg6: memref<8x8xbf16, #tpu.memory_space<vmem>>) attributes {dimension_semantics = [#tpu.dimension_semantics<parallel>], iteration_bounds = array<i64: 1>, scalar_prefetch = 0 : i64, scratch_operands = 0 : i64, tpu.core_type = #tpu.core_type<tc>, window_params = [{transform_indices = @transform_0, window_bounds = array<i64: 8, 16>}, {pipeline_mode = #tpu.pipeline_mode<synchronous>, transform_indices = @transform_1, window_bounds = array<i64: 16, 32>}, {pipeline_mode = #tpu.pipeline_mode<synchronous>, transform_indices = @transform_2, window_bounds = array<i64: 32, 32>}, {pipeline_mode = #tpu.pipeline_mode<synchronous>, transform_indices = @transform_3, window_bounds = array<i64: 32, 8>}, {pipeline_mode = #tpu.pipeline_mode<synchronous>, transform_indices = @transform_4, window_bounds = array<i64: 1, 32>}, {transform_indices = @transform_5, window_bounds = array<i64: 8, 8>}]} {
    %c0 = arith.constant 0 : index
    %c0_0 = arith.constant 0 : index
    %0 = vector.load %arg5[%c0, %c0_0] : memref<1x32xf32, #tpu.memory_space<vmem>>, vector<1x32xf32>
    %c0_1 = arith.constant 0 : index
    %c0_2 = arith.constant 0 : index
    %1 = vector.load %arg1[%c0_1, %c0_2] : memref<8x16xf32, #tpu.memory_space<vmem>>, vector<8x16xf32>
    %2 = arith.truncf %1 : vector<8x16xf32> to vector<8x16xbf16>
    %c0_3 = arith.constant 0 : index
    %c0_4 = arith.constant 0 : index
    %3 = vector.load %arg2[%c0_3, %c0_4] : memref<16x32xbf16, #tpu.memory_space<vmem>>, vector<16x32xbf16>
    %cst = arith.constant dense<0.000000e+00> : vector<8x32xf32>
    %4 = tpu.matmul %2, %3, %cst {dimension_numbers = #tpu.dot_dimension_numbers<[1], [0], [0], [1], [0, 0, 1, 1], [], []>} : vector<8x16xbf16>, vector<16x32xbf16>, vector<8x32xf32> -> vector<8x32xf32>
    %5 = vector.broadcast %0 : vector<1x32xf32> to vector<8x32xf32>
    %6 = arith.addf %4, %5 : vector<8x32xf32>
    %cst_5 = arith.constant 0.000000e+00 : f32
    %7 = vector.broadcast %cst_5 : f32 to vector<8x32xf32>
    %8 = arith.maximumf %6, %7 : vector<8x32xf32>
    %9 = arith.truncf %8 : vector<8x32xf32> to vector<8x32xbf16>
    %c0_6 = arith.constant 0 : index
    %c0_7 = arith.constant 0 : index
    %10 = vector.load %arg3[%c0_6, %c0_7] : memref<32x32xbf16, #tpu.memory_space<vmem>>, vector<32x32xbf16>
    %cst_8 = arith.constant dense<0.000000e+00> : vector<8x32xf32>
    %11 = tpu.matmul %9, %10, %cst_8 {dimension_numbers = #tpu.dot_dimension_numbers<[1], [0], [0], [1], [0, 0, 1, 1], [], []>} : vector<8x32xbf16>, vector<32x32xbf16>, vector<8x32xf32> -> vector<8x32xf32>
    %12 = vector.broadcast %0 : vector<1x32xf32> to vector<8x32xf32>
    %13 = arith.addf %11, %12 : vector<8x32xf32>
    %cst_9 = arith.constant 0.000000e+00 : f32
    %14 = vector.broadcast %cst_9 : f32 to vector<8x32xf32>
    %15 = arith.maximumf %13, %14 : vector<8x32xf32>
    %16 = arith.truncf %15 : vector<8x32xf32> to vector<8x32xbf16>
    %c0_10 = arith.constant 0 : index
    %c0_11 = arith.constant 0 : index
    %17 = vector.load %arg4[%c0_10, %c0_11] : memref<32x8xbf16, #tpu.memory_space<vmem>>, vector<32x8xbf16>
    %cst_12 = arith.constant dense<0.000000e+00> : vector<8x8xf32>
    %18 = tpu.matmul %16, %17, %cst_12 {dimension_numbers = #tpu.dot_dimension_numbers<[1], [0], [0], [1], [0, 0, 1, 1], [], []>} : vector<8x32xbf16>, vector<32x8xbf16>, vector<8x8xf32> -> vector<8x8xf32>
    %cst_13 = arith.constant dense<0xFF800000> : vector<8xf32>
    %19 = vector.multi_reduction <maximumf>, %18, %cst_13 [1] : vector<8x8xf32> to vector<8xf32>
    %20 = vector.shape_cast %19 : vector<8xf32> to vector<8x1xf32>
    %21 = vector.broadcast %20 : vector<8x1xf32> to vector<8x8xf32>
    %22 = arith.subf %18, %21 : vector<8x8xf32>
    %23 = math.exp %22 : vector<8x8xf32>
    %cst_14 = arith.constant dense<0.000000e+00> : vector<8xf32>
    %24 = vector.multi_reduction <add>, %23, %cst_14 [1] : vector<8x8xf32> to vector<8xf32>
    %25 = vector.shape_cast %24 : vector<8xf32> to vector<8x1xf32>
    %26 = vector.broadcast %25 : vector<8x1xf32> to vector<8x8xf32>
    %27 = arith.divf %23, %26 : vector<8x8xf32>
    %28 = arith.truncf %27 : vector<8x8xf32> to vector<8x8xbf16>
    %c0_15 = arith.constant 0 : index
    %c0_16 = arith.constant 0 : index
    %29 = vector.load %arg6[%c0_15, %c0_16] : memref<8x8xbf16, #tpu.memory_space<vmem>>, vector<8x8xbf16>
    tpu.vector_store %arg6[%c0_15, %c0_16], %28 {strides = array<i32>} : memref<8x8xbf16, #tpu.memory_space<vmem>>, vector<8x8xbf16>,
    return
  }
  func.func @transform_0(%arg0: i32) -> (i32, i32) {
    %c0_i32 = arith.constant 0 : i32
    %c0_i32_0 = arith.constant 0 : i32
    return %arg0, %c0_i32 : i32, i32
  }
  func.func @transform_1(%arg0: i32) -> (i32, i32) {
    %c0_i32 = arith.constant 0 : i32
    %c0_i32_0 = arith.constant 0 : i32
    %c0_i32_1 = arith.constant 0 : i32
    return %c0_i32, %c0_i32_0 : i32, i32
  }
  func.func @transform_2(%arg0: i32) -> (i32, i32) {
    %c0_i32 = arith.constant 0 : i32
    %c0_i32_0 = arith.constant 0 : i32
    %c0_i32_1 = arith.constant 0 : i32
    return %c0_i32, %c0_i32_0 : i32, i32
  }
  func.func @transform_3(%arg0: i32) -> (i32, i32) {
    %c0_i32 = arith.constant 0 : i32
    %c0_i32_0 = arith.constant 0 : i32
    %c0_i32_1 = arith.constant 0 : i32
    return %c0_i32, %c0_i32_0 : i32, i32
  }
  func.func @transform_4(%arg0: i32) -> (i32, i32) {
    %c0_i32 = arith.constant 0 : i32
    %c0_i32_0 = arith.constant 0 : i32
    %c0_i32_1 = arith.constant 0 : i32
    return %c0_i32, %c0_i32_0 : i32, i32
  }
  func.func @transform_5(%arg0: i32) -> (i32, i32) {
    %c0_i32 = arith.constant 0 : i32
    %c0_i32_0 = arith.constant 0 : i32
    return %arg0, %c0_i32 : i32, i32
  }
}

</mosaic_0001>

<llo_original>
// kernel: topopt_nn_forward.1
$region0: #{topopt_nn_forward.1}
  #allocation0 [shape = 'u32[]', space=smem, size = 0x4, offset = 0x4, fixed_abs, tag = 'smem constant byte address 0x4 - core index']
  #allocation1 [shape = 'u32[144,128]{1,0:T(1,128)}', space=vmem, size = 0x12000, scoped, tag = 'internal scratch']
  %s0 = inlined_call_operand.vmem [shape: f32[8,16], index: 0, kind: input, shape index: {}]
  %s1 = inlined_call_operand.vmem [shape: bf16[16,32], index: 1, kind: input, shape index: {}]
  %s2 = inlined_call_operand.vmem [shape: bf16[32,32], index: 2, kind: input, shape index: {}]
  %s3 = inlined_call_operand.vmem [shape: bf16[32,8], index: 3, kind: input, shape index: {}]
  %s4 = inlined_call_operand.vmem [shape: f32[1,32], index: 4, kind: input, shape index: {}]
  %s5 = inlined_call_operand.hbm [shape: bf16[8,8], index: 5, kind: output, shape index: {}]
  %s6 = sld [smem:[#allocation0]]
  $region30: #{topopt_nn_forward.1} parent=0
    _
  %s8 = ssub.s32 1, %s6
  %s9 = scalar_select 0, %s8, %s6
  $region1: #{topopt_nn_forward.1} parent=0
    #allocation2 [shape = 'u8[2048]{0}', space=vmem, size = 0x800, scoped, tag = 'output window, operand 0, single buffered']
    #allocation3 [shape = 's32[1]{0}', space=sflag, size = 0x4, scoped, tag = 'scoped memory for topopt_nn_forward.1']
    %10 = vsyncpa [#allocation3], 0
    // Predicated region
    $region2: #{topopt_nn_forward.1} parent=1 // pred_check
      _
    $region3: #{topopt_nn_forward.1} parent=1 // pred_check_branch
      %12 = sbr.rel (0) target = $region5
    $region4: #{topopt_nn_forward.1} parent=1 // pred_region
      _
    $region5: #{topopt_nn_forward.1} parent=1 // pred_fallthru
      _
    // Predicated region
    $region6: #{topopt_nn_forward.1} parent=1 // pred_check
      _
    $region7: #{topopt_nn_forward.1} parent=1 // pred_check_branch
      %14 = sbr.rel (0) target = $region9
    $region8: #{topopt_nn_forward.1} parent=1 // pred_region
      _
    $region9: #{topopt_nn_forward.1} parent=1 // pred_fallthru
      _
    // Predicated region
    $region10: #{topopt_nn_forward.1} parent=1 // pred_check
      _
    $region11: #{topopt_nn_forward.1} parent=1 // pred_check_branch
      %16 = sbr.rel (0) target = $region13
    $region12: #{topopt_nn_forward.1} parent=1 // pred_region
      _
    $region13: #{topopt_nn_forward.1} parent=1 // pred_fallthru
      _
    // Predicated region
    $region14: #{topopt_nn_forward.1} parent=1 // pred_check
      _
    $region15: #{topopt_nn_forward.1} parent=1 // pred_check_branch
      %18 = sbr.rel (0) target = $region17
    $region16: #{topopt_nn_forward.1} parent=1 // pred_region
      _
    $region17: #{topopt_nn_forward.1} parent=1 // pred_fallthru
      _
    // Predicated region
    $region18: #{topopt_nn_forward.1} parent=1 // pred_check
      _
    $region19: #{topopt_nn_forward.1} parent=1 // pred_check_branch
      %20 = sbr.rel (0) target = $region21
    $region20: #{topopt_nn_forward.1} parent=1 // pred_region
      _
    $region21: #{topopt_nn_forward.1} parent=1 // pred_fallthru
      _
    %v22 = vld [vmem:[%s4] sm:$0x1]
    %v23 = vld [vmem:[%s0] sm:$0xff]
    %v24 = vpack.c.bf16 %v23, %v23
    %v25 = vld [vmem:[%s1] sm:$0xf]
    %v26 = vld [vmem:[%s1 + $0x4] sm:$0xf]
    %v28 = vlaneseq
    %v29 = vshrl.u32 %v28, 7
    %v30 = vsub.s32 0, %v29
    %v31 = vrot.slane %v22, %v30
    %v35 = vunpack.c.l.b16 %v25
    %v36 = vunpack.c.l.b16 %v26
    %v37 = vpack.c.b16 %v36, %v35
    %vm39 = vcmask 130048
    %v41 = vsel %vm39, %v24, 0
    %43 = vmatprep.subr.bf16.mxu0 0
    %44 = vmatpush1.bf16.msra.mxu0 0
    %45 = vmatprep.subr.bf16.mxu0 0
    %46 = vmatpush1.bf16.msra.mxu0 0
    %47 = vmatprep.subr.bf16.mxu0 0
    %48 = vmatpush1.bf16.msra.mxu0 0
    %49 = vmatprep.subr.bf16.mxu0 0
    %50 = vmatpush1.bf16.msra.mxu0 0
    %51 = vmatprep.subr.bf16.mxu0 0
    %52 = vmatpush1.bf16.msra.mxu0 0
    %53 = vmatprep.subr.bf16.mxu0 0
    %54 = vmatpush1.bf16.msra.mxu0 0
    %55 = vmatprep.subr.bf16.mxu0 0
    %56 = vmatpush1.bf16.msra.mxu0 0
    %57 = vmatprep.subr.bf16.mxu0 0
    %58 = vmatpush1.bf16.msra.mxu0 %v37
    %59 = vmatprep.subr.bf16.mxu0 0
    %60 = vmatpush2.bf16.msra.mxu0 0
    %61 = vmatprep.subr.bf16.mxu0 0
    %62 = vmatpush2.bf16.msra.mxu0 0
    %63 = vmatprep.subr.bf16.mxu0 0
    %64 = vmatpush2.bf16.msra.mxu0 0
    %65 = vmatprep.subr.bf16.mxu0 0
    %66 = vmatpush2.bf16.msra.mxu0 0
    %67 = vmatprep.subr.bf16.mxu0 0
    %68 = vmatpush2.bf16.msra.mxu0 0
    %69 = vmatprep.subr.bf16.mxu0 0
    %70 = vmatpush2.bf16.msra.mxu0 0
    %71 = vmatprep.subr.bf16.mxu0 0
    %72 = vmatpush2.bf16.msra.mxu0 0
    %73 = vmatprep.subr.bf16.mxu0 0
    %74 = vmatpush2.bf16.msra.mxu0 0
    %75 = vmatprep.mubr.bf16.mxu0 0
    %76 = vmatmul.mubr.bf16.gmra.mxu0 %v41
    %v77 = vpop.f32.mrf.mxu0
    %v78 = vadd.f32 %v31, %v77
    %v79 = vpop.f32.mrf.mxu0
    %v80 = vpop.f32.mrf.mxu0
    %v81 = vpop.f32.mrf.mxu0
    %82 = vdwg.mxu0
    %v83 = vmax.f32 %v78, 0.0
    %v84 = vpack.c.bf16 %v83, %v83
    %v85 = vld [vmem:[%s2] sm:$0xf]
    %v86 = vld [vmem:[%s2 + $0x4] sm:$0xf]
    %v87 = vld [vmem:[%s2 + $0x8] sm:$0xf]
    %v88 = vld [vmem:[%s2 + $0xc] sm:$0xf]
    %v93 = vunpack.c.l.b16 %v85
    %v94 = vunpack.c.l.b16 %v86
    %v95 = vunpack.c.l.b16 %v87
    %v96 = vunpack.c.l.b16 %v88
    %v97 = vpack.c.b16 %v94, %v93
    %v98 = vpack.c.b16 %v96, %v95
    %vm101 = vcmask 261120
    %v103 = vsel %vm101, %v84, 0
    %105 = vmatprep.subr.bf16.mxu0 0
    %106 = vmatpush1.bf16.msra.mxu0 0
    %107 = vmatprep.subr.bf16.mxu0 0
    %108 = vmatpush1.bf16.msra.mxu0 0
    %109 = vmatprep.subr.bf16.mxu0 0
    %110 = vmatpush1.bf16.msra.mxu0 0
    %111 = vmatprep.subr.bf16.mxu0 0
    %112 = vmatpush1.bf16.msra.mxu0 0
    %113 = vmatprep.subr.bf16.mxu0 0
    %114 = vmatpush1.bf16.msra.mxu0 0
    %115 = vmatprep.subr.bf16.mxu0 0
    %116 = vmatpush1.bf16.msra.mxu0 0
    %117 = vmatprep.subr.bf16.mxu0 0
    %118 = vmatpush1.bf16.msra.mxu0 %v98
    %119 = vmatprep.subr.bf16.mxu0 0
    %120 = vmatpush1.bf16.msra.mxu0 %v97
    %121 = vmatprep.subr.bf16.mxu0 0
    %122 = vmatpush2.bf16.msra.mxu0 0
    %123 = vmatprep.subr.bf16.mxu0 0
    %124 = vmatpush2.bf16.msra.mxu0 0
    %125 = vmatprep.subr.bf16.mxu0 0
    %126 = vmatpush2.bf16.msra.mxu0 0
    %127 = vmatprep.subr.bf16.mxu0 0
    %128 = vmatpush2.bf16.msra.mxu0 0
    %129 = vmatprep.subr.bf16.mxu0 0
    %130 = vmatpush2.bf16.msra.mxu0 0
    %131 = vmatprep.subr.bf16.mxu0 0
    %132 = vmatpush2.bf16.msra.mxu0 0
    %133 = vmatprep.subr.bf16.mxu0 0
    %134 = vmatpush2.bf16.msra.mxu0 0
    %135 = vmatprep.subr.bf16.mxu0 0
    %136 = vmatpush2.bf16.msra.mxu0 0
    %137 = vmatprep.mubr.bf16.mxu0 0
    %138 = vmatmul.mubr.bf16.gmra.mxu0 %v103
    %v139 = vpop.f32.mrf.mxu0
    %v140 = vadd.f32 %v31, %v139
    %v141 = vpop.f32.mrf.mxu0
    %v142 = vpop.f32.mrf.mxu0
    %v143 = vpop.f32.mrf.mxu0
    %144 = vdwg.mxu0
    %v145 = vmax.f32 %v140, 0.0
    %v146 = vpack.c.bf16 %v145, %v145
    %v147 = vld [vmem:[%s3] sm:$0xf]
    %v148 = vld [vmem:[%s3 + $0x4] sm:$0xf]
    %v149 = vld [vmem:[%s3 + $0x8] sm:$0xf]
    %v150 = vld [vmem:[%s3 + $0xc] sm:$0xf]
    %v155 = vunpack.c.l.b16 %v147
    %v156 = vunpack.c.l.b16 %v148
    %v157 = vunpack.c.l.b16 %v149
    %v158 = vunpack.c.l.b16 %v150
    %v159 = vpack.c.b16 %v156, %v155
    %v160 = vpack.c.b16 %v158, %v157
    %v164 = vsel %vm101, %v146, 0
    %166 = vmatprep.subr.bf16.mxu0 0
    %167 = vmatpush1.bf16.msra.mxu0 0
    %168 = vmatprep.subr.bf16.mxu0 0
    %169 = vmatpush1.bf16.msra.mxu0 0
    %170 = vmatprep.subr.bf16.mxu0 0
    %171 = vmatpush1.bf16.msra.mxu0 0
    %172 = vmatprep.subr.bf16.mxu0 0
    %173 = vmatpush1.bf16.msra.mxu0 0
    %174 = vmatprep.subr.bf16.mxu0 0
    %175 = vmatpush1.bf16.msra.mxu0 0
    %176 = vmatprep.subr.bf16.mxu0 0
    %177 = vmatpush1.bf16.msra.mxu0 0
    %178 = vmatprep.subr.bf16.mxu0 0
    %179 = vmatpush1.bf16.msra.mxu0 %v160
    %180 = vmatprep.subr.bf16.mxu0 0
    %181 = vmatpush1.bf16.msra.mxu0 %v159
    %182 = vmatprep.subr.bf16.mxu0 0
    %183 = vmatpush2.bf16.msra.mxu0 0
    %184 = vmatprep.subr.bf16.mxu0 0
    %185 = vmatpush2.bf16.msra.mxu0 0
    %186 = vmatprep.subr.bf16.mxu0 0
    %187 = vmatpush2.bf16.msra.mxu0 0
    %188 = vmatprep.subr.bf16.mxu0 0
    %189 = vmatpush2.bf16.msra.mxu0 0
    %190 = vmatprep.subr.bf16.mxu0 0
    %191 = vmatpush2.bf16.msra.mxu0 0
    %192 = vmatprep.subr.bf16.mxu0 0
    %193 = vmatpush2.bf16.msra.mxu0 0
    %194 = vmatprep.subr.bf16.mxu0 0
    %195 = vmatpush2.bf16.msra.mxu0 0
    %196 = vmatprep.subr.bf16.mxu0 0
    %197 = vmatpush2.bf16.msra.mxu0 0
    %198 = vmatprep.mubr.bf16.mxu0 0
    %199 = vmatmul.mubr.bf16.gmra.mxu0 %v164
    %v200 = vpop.f32.mrf.mxu0
    %v201 = vadd.f32 0.0, %v200
    %v202 = vpop.f32.mrf.mxu0
    %v203 = vpop.f32.mrf.mxu0
    %v204 = vpop.f32.mrf.mxu0
    %205 = vdwg.mxu0
    %vm206 = vcmask 64512
    %v207 = vsel %vm206, %v201, -inf
    %208 = vmax.xlane.f32.xlu0 %v207
    %v209 = vpop.xlane.xlu0 %208
    %v210 = vsub.f32 %v201, %v209
    %v211 = vmul.f32 %v210, 1.442695
    %v212 = vpow.pop %v211
    %v213 = vsel %vm206, %v212, 0.0
    %214 = vadd.xlane.f32.xlu0 %v213
    %v215 = vpop.xlane.xlu0 %214
    %v216 = vrcp.pop %v215
    %v217 = vmul.f32 %v212, %v216
    %v218 = vpack.c.bf16 %v217, %v217
    %vm219 = vcmask 60416
    %220 = vst.msk [vmem:[#allocation2] sm:$0xf] %vm219, %v218
    // Predicated region
    $region22: #{topopt_nn_forward.1} parent=1 // pred_check
      _
    $region23: #{topopt_nn_forward.1} parent=1 // pred_check_branch
      %222 = sbr.rel (0) target = $region25
    $region24: #{topopt_nn_forward.1} parent=1 // pred_region
      %s224 = ssub.s32 64, 64
      %225 = vsyncadd [#allocation3], %s224
      %s227 = sshll.u32 [#allocation2], 4
      %s228 = int_to_ptr.vmem [resolvable:$true] %s227
      %230 = dma.vmem_to_hbm [thread:$0]  %s228, 64, %s5, [#allocation3]
    $region25: #{topopt_nn_forward.1} parent=1 // pred_fallthru
      _
    // Predicated region
    $region26: #{topopt_nn_forward.1} parent=1 // pred_check
      _
    $region27: #{topopt_nn_forward.1} parent=1 // pred_check_branch
      %232 = sbr.rel (0) target = $region29
    $region28: #{topopt_nn_forward.1} parent=1 // pred_region
      %233 = dma.done [#allocation3], 64
    $region29: #{topopt_nn_forward.1} parent=1 // pred_fallthru
      _
    %234 = vsyncpa [#allocation3], 1

</llo_original>
